<compile_context>
chip_gen: v7x
topology: tpu7x:2x2x1
jax: 0.10.0
libtpu: 0.0.40
codegen_flags: <defaults>
</compile_context>

<pallas_src>
import math

import jax
import jax.numpy as jnp
from jax.experimental import pallas as pl
from jax.experimental.pallas import tpu as pltpu

H1 = 32
LANES = 128


def _round_up(x, m):
    return ((x + m - 1) // m) * m


def actor_kernel(x_ref,
                 w1_ref, b1_ref,
                 w2_ref, b2_ref,
                 w3_ref, b3_ref,
                 w4_ref, b4_ref,
                 o_ref):
    # Hoist bias loads once per tile (f32).
    b1 = b1_ref[...]
    b2 = b2_ref[...]
    b3 = b3_ref[...]
    b4 = b4_ref[...]

    # bf16 MXU inputs, f32 accumulation; elementwise (bias, ReLU) stays f32.
    x = x_ref[...].astype(jnp.bfloat16)
    h = jnp.dot(x, w1_ref[...], preferred_element_type=jnp.float32) + b1
    h = jnp.maximum(h, 0.0)
    h = jnp.dot(h.astype(jnp.bfloat16), w2_ref[...],
                preferred_element_type=jnp.float32) + b2
    h = jnp.maximum(h, 0.0)
    h = jnp.dot(h.astype(jnp.bfloat16), w3_ref[...],
                preferred_element_type=jnp.float32) + b3
    h = jnp.maximum(h, 0.0)
    out = jnp.dot(h.astype(jnp.bfloat16), w4_ref[...],
                  preferred_element_type=jnp.float32) + b4
    o_ref[...] = out.astype(o_ref.dtype)


def init_linear(key, fan_in, fan_out):
    """torch.nn.Linear-style init (uniform +/- 1/sqrt(fan_in)).
    Returns W with shape [fan_in, fan_out] (already transposed for x @ W)."""
    kw, kb = jax.random.split(key)
    bound = 1.0 / math.sqrt(fan_in)
    w = jax.random.uniform(kw, (fan_in, fan_out), jnp.float32, -bound, bound)
    b = jax.random.uniform(kb, (1, fan_out), jnp.float32, -bound, bound)
    return w, b


def make_actor_params(key, n_states, action_dim, hidden=H1):
    k1, k2, k3, k4 = jax.random.split(key, 4)
    w1, b1 = init_linear(k1, n_states, hidden)
    w2, b2 = init_linear(k2, hidden, hidden)
    w3, b3 = init_linear(k3, hidden, hidden)
    w4, b4 = init_linear(k4, hidden, action_dim)
    return (w1, b1, w2, b2, w3, b3, w4, b4)


@jax.jit
def actor_forward(state, params):
    w1, b1, w2, b2, w3, b3, w4, b4 = params
    batch, n_states = state.shape
    hidden = w1.shape[-1]
    action_dim = w4.shape[-1]

    # Lane-dense output slab: pad the final layer to a 128-wide output.
    out_pad = _round_up(max(action_dim, LANES), LANES)
    w4p = jnp.zeros((hidden, out_pad), w4.dtype).at[:, :action_dim].set(w4)
    b4p = jnp.zeros((1, out_pad), b4.dtype).at[:, :action_dim].set(b4)

    # bf16 weights for the MXU (accumulation stays f32 inside the kernel).
    w1b = w1.astype(jnp.bfloat16)
    w2b = w2.astype(jnp.bfloat16)
    w3b = w3.astype(jnp.bfloat16)
    w4b = w4p.astype(jnp.bfloat16)

    # Batch tile: match MXU height when the batch allows it (256 on v6e/v7x;
    # any multiple of 128 is also fine on v5e). Small batches -> one tile.
    if batch <= 256:
        tb = _round_up(batch, 8)
    elif batch >= 1024:
        tb = 1024
    else:
        tb = 256
    padded = _round_up(batch, tb)
    x = state
    if padded != batch:
        x = jnp.pad(x, ((0, padded - batch), (0, 0)))

    const2 = lambda i: (0, 0)  # weights/biases: fetched once, resident in VMEM

    out = pl.pallas_call(
        actor_kernel,
        out_shape=jax.ShapeDtypeStruct((padded, out_pad), jnp.float32),
        grid=(padded // tb,),
        in_specs=[
            pl.BlockSpec((tb, n_states), lambda i: (i, 0)),
            pl.BlockSpec(w1b.shape, const2), pl.BlockSpec(b1.shape, const2),
            pl.BlockSpec(w2b.shape, const2), pl.BlockSpec(b2.shape, const2),
            pl.BlockSpec(w3b.shape, const2), pl.BlockSpec(b3.shape, const2),
            pl.BlockSpec(w4b.shape, const2), pl.BlockSpec(b4p.shape, const2),
        ],
        out_specs=pl.BlockSpec((tb, out_pad), lambda i: (i, 0)),
        compiler_params=pltpu.CompilerParams(
            dimension_semantics=("parallel",)),
    )(x, w1b, b1, w2b, b2, w3b, b3, w4b, b4p)

    return out[:batch, :action_dim]


def actor_forward_ref(state, params):
    """Pure-JAX reference mirroring the kernel's numerics (bf16 MXU inputs,
    f32 accumulation, f32 bias/ReLU)."""
    w1, b1, w2, b2, w3, b3, w4, b4 = params

    def lin(x, w, b):
        return jnp.dot(x.astype(jnp.bfloat16), w.astype(jnp.bfloat16),
                       preferred_element_type=jnp.float32) + b

    h = jnp.maximum(lin(state, w1, b1), 0.0)
    h = jnp.maximum(lin(h, w2, b2), 0.0)
    h = jnp.maximum(lin(h, w3, b3), 0.0)
    return lin(h, w4, b4)


if __name__ == "__main__":
    key = jax.random.PRNGKey(0)
    k_params, k_state, k_big = jax.random.split(key, 3)

    batch = 8
    n_states = 16
    action_dim = 4

    params = make_actor_params(k_params, n_states, action_dim, H1)

    # Small batch (single tile path).
    state = jax.random.normal(k_state, (batch, n_states), jnp.float32)
    out = actor_forward(state, params)
    jax.block_until_ready(out)
    ref = actor_forward_ref(state, params)
    assert out.shape == (batch, action_dim)
    assert jnp.allclose(out, ref, atol=1e-3, rtol=1e-3)

    # Larger, non-tile-aligned batch (exercises grid + batch padding).
    big_batch = 600
    state_big = jax.random.normal(k_big, (big_batch, n_states), jnp.float32)
    out_big = actor_forward(state_big, params)
    jax.block_until_ready(out_big)
    ref_big = actor_forward_ref(state_big, params)
    assert out_big.shape == (big_batch, action_dim)
    assert jnp.allclose(out_big, ref_big, atol=1e-3, rtol=1e-3)

    print("KERNEL_OK")
</pallas_src>

<mosaic_0001>
module attributes {stable_mosaic.version = 11 : i64} {
  func.func @actor_kernel(%arg0: i32, %arg1: memref<8x16xf32, #tpu.memory_space<vmem>>, %arg2: memref<16x32xbf16, #tpu.memory_space<vmem>>, %arg3: memref<1x32xf32, #tpu.memory_space<vmem>>, %arg4: memref<32x32xbf16, #tpu.memory_space<vmem>>, %arg5: memref<1x32xf32, #tpu.memory_space<vmem>>, %arg6: memref<32x32xbf16, #tpu.memory_space<vmem>>, %arg7: memref<1x32xf32, #tpu.memory_space<vmem>>, %arg8: memref<32x128xbf16, #tpu.memory_space<vmem>>, %arg9: memref<1x128xf32, #tpu.memory_space<vmem>>, %arg10: memref<8x128xf32, #tpu.memory_space<vmem>>) attributes {dimension_semantics = [#tpu.dimension_semantics<parallel>], iteration_bounds = array<i64: 1>, scalar_prefetch = 0 : i64, scratch_operands = 0 : i64, tpu.core_type = #tpu.core_type<tc>, window_params = [{transform_indices = @transform_0, window_bounds = array<i64: 8, 16>}, {pipeline_mode = #tpu.pipeline_mode<synchronous>, transform_indices = @transform_1, window_bounds = array<i64: 16, 32>}, {pipeline_mode = #tpu.pipeline_mode<synchronous>, transform_indices = @transform_2, window_bounds = array<i64: 1, 32>}, {pipeline_mode = #tpu.pipeline_mode<synchronous>, transform_indices = @transform_3, window_bounds = array<i64: 32, 32>}, {pipeline_mode = #tpu.pipeline_mode<synchronous>, transform_indices = @transform_4, window_bounds = array<i64: 1, 32>}, {pipeline_mode = #tpu.pipeline_mode<synchronous>, transform_indices = @transform_5, window_bounds = array<i64: 32, 32>}, {pipeline_mode = #tpu.pipeline_mode<synchronous>, transform_indices = @transform_6, window_bounds = array<i64: 1, 32>}, {pipeline_mode = #tpu.pipeline_mode<synchronous>, transform_indices = @transform_7, window_bounds = array<i64: 32, 128>}, {pipeline_mode = #tpu.pipeline_mode<synchronous>, transform_indices = @transform_8, window_bounds = array<i64: 1, 128>}, {transform_indices = @transform_9, window_bounds = array<i64: 8, 128>}]} {
    %c0 = arith.constant 0 : index
    %c0_0 = arith.constant 0 : index
    %0 = vector.load %arg3[%c0, %c0_0] : memref<1x32xf32, #tpu.memory_space<vmem>>, vector<1x32xf32>
    %c0_1 = arith.constant 0 : index
    %c0_2 = arith.constant 0 : index
    %1 = vector.load %arg5[%c0_1, %c0_2] : memref<1x32xf32, #tpu.memory_space<vmem>>, vector<1x32xf32>
    %c0_3 = arith.constant 0 : index
    %c0_4 = arith.constant 0 : index
    %2 = vector.load %arg7[%c0_3, %c0_4] : memref<1x32xf32, #tpu.memory_space<vmem>>, vector<1x32xf32>
    %c0_5 = arith.constant 0 : index
    %c0_6 = arith.constant 0 : index
    %3 = vector.load %arg9[%c0_5, %c0_6] : memref<1x128xf32, #tpu.memory_space<vmem>>, vector<1x128xf32>
    %c0_7 = arith.constant 0 : index
    %c0_8 = arith.constant 0 : index
    %4 = vector.load %arg1[%c0_7, %c0_8] : memref<8x16xf32, #tpu.memory_space<vmem>>, vector<8x16xf32>
    %5 = arith.truncf %4 : vector<8x16xf32> to vector<8x16xbf16>
    %c0_9 = arith.constant 0 : index
    %c0_10 = arith.constant 0 : index
    %6 = vector.load %arg2[%c0_9, %c0_10] : memref<16x32xbf16, #tpu.memory_space<vmem>>, vector<16x32xbf16>
    %cst = arith.constant dense<0.000000e+00> : vector<8x32xf32>
    %7 = tpu.matmul %5, %6, %cst {dimension_numbers = #tpu.dot_dimension_numbers<[1], [0], [0], [1], [0, 0, 1, 1], [], []>} : vector<8x16xbf16>, vector<16x32xbf16>, vector<8x32xf32> -> vector<8x32xf32>
    %8 = vector.broadcast %0 : vector<1x32xf32> to vector<8x32xf32>
    %9 = arith.addf %7, %8 : vector<8x32xf32>
    %cst_11 = arith.constant 0.000000e+00 : f32
    %10 = vector.broadcast %cst_11 : f32 to vector<8x32xf32>
    %11 = arith.maximumf %9, %10 : vector<8x32xf32>
    %12 = arith.truncf %11 : vector<8x32xf32> to vector<8x32xbf16>
    %c0_12 = arith.constant 0 : index
    %c0_13 = arith.constant 0 : index
    %13 = vector.load %arg4[%c0_12, %c0_13] : memref<32x32xbf16, #tpu.memory_space<vmem>>, vector<32x32xbf16>
    %cst_14 = arith.constant dense<0.000000e+00> : vector<8x32xf32>
    %14 = tpu.matmul %12, %13, %cst_14 {dimension_numbers = #tpu.dot_dimension_numbers<[1], [0], [0], [1], [0, 0, 1, 1], [], []>} : vector<8x32xbf16>, vector<32x32xbf16>, vector<8x32xf32> -> vector<8x32xf32>
    %15 = vector.broadcast %1 : vector<1x32xf32> to vector<8x32xf32>
    %16 = arith.addf %14, %15 : vector<8x32xf32>
    %cst_15 = arith.constant 0.000000e+00 : f32
    %17 = vector.broadcast %cst_15 : f32 to vector<8x32xf32>
    %18 = arith.maximumf %16, %17 : vector<8x32xf32>
    %19 = arith.truncf %18 : vector<8x32xf32> to vector<8x32xbf16>
    %c0_16 = arith.constant 0 : index
    %c0_17 = arith.constant 0 : index
    %20 = vector.load %arg6[%c0_16, %c0_17] : memref<32x32xbf16, #tpu.memory_space<vmem>>, vector<32x32xbf16>
    %cst_18 = arith.constant dense<0.000000e+00> : vector<8x32xf32>
    %21 = tpu.matmul %19, %20, %cst_18 {dimension_numbers = #tpu.dot_dimension_numbers<[1], [0], [0], [1], [0, 0, 1, 1], [], []>} : vector<8x32xbf16>, vector<32x32xbf16>, vector<8x32xf32> -> vector<8x32xf32>
    %22 = vector.broadcast %2 : vector<1x32xf32> to vector<8x32xf32>
    %23 = arith.addf %21, %22 : vector<8x32xf32>
    %cst_19 = arith.constant 0.000000e+00 : f32
    %24 = vector.broadcast %cst_19 : f32 to vector<8x32xf32>
    %25 = arith.maximumf %23, %24 : vector<8x32xf32>
    %26 = arith.truncf %25 : vector<8x32xf32> to vector<8x32xbf16>
    %c0_20 = arith.constant 0 : index
    %c0_21 = arith.constant 0 : index
    %27 = vector.load %arg8[%c0_20, %c0_21] : memref<32x128xbf16, #tpu.memory_space<vmem>>, vector<32x128xbf16>
    %cst_22 = arith.constant dense<0.000000e+00> : vector<8x128xf32>
    %28 = tpu.matmul %26, %27, %cst_22 {dimension_numbers = #tpu.dot_dimension_numbers<[1], [0], [0], [1], [0, 0, 1, 1], [], []>} : vector<8x32xbf16>, vector<32x128xbf16>, vector<8x128xf32> -> vector<8x128xf32>
    %29 = vector.broadcast %3 : vector<1x128xf32> to vector<8x128xf32>
    %30 = arith.addf %28, %29 : vector<8x128xf32>
    %c0_23 = arith.constant 0 : index
    %c0_24 = arith.constant 0 : index
    %31 = vector.load %arg10[%c0_23, %c0_24] : memref<8x128xf32, #tpu.memory_space<vmem>>, vector<8x128xf32>
    tpu.vector_store %arg10[%c0_23, %c0_24], %30 {strides = array<i32>} : memref<8x128xf32, #tpu.memory_space<vmem>>, vector<8x128xf32>,
    return
  }
  func.func @transform_0(%arg0: i32) -> (i32, i32) {
    %c0_i32 = arith.constant 0 : i32
    %c0_i32_0 = arith.constant 0 : i32
    return %arg0, %c0_i32 : i32, i32
  }
  func.func @transform_1(%arg0: i32) -> (i32, i32) {
    %c0_i32 = arith.constant 0 : i32
    %c0_i32_0 = arith.constant 0 : i32
    %c0_i32_1 = arith.constant 0 : i32
    return %c0_i32, %c0_i32_0 : i32, i32
  }
  func.func @transform_2(%arg0: i32) -> (i32, i32) {
    %c0_i32 = arith.constant 0 : i32
    %c0_i32_0 = arith.constant 0 : i32
    %c0_i32_1 = arith.constant 0 : i32
    return %c0_i32, %c0_i32_0 : i32, i32
  }
  func.func @transform_3(%arg0: i32) -> (i32, i32) {
    %c0_i32 = arith.constant 0 : i32
    %c0_i32_0 = arith.constant 0 : i32
    %c0_i32_1 = arith.constant 0 : i32
    return %c0_i32, %c0_i32_0 : i32, i32
  }
  func.func @transform_4(%arg0: i32) -> (i32, i32) {
    %c0_i32 = arith.constant 0 : i32
    %c0_i32_0 = arith.constant 0 : i32
    %c0_i32_1 = arith.constant 0 : i32
    return %c0_i32, %c0_i32_0 : i32, i32
  }
  func.func @transform_5(%arg0: i32) -> (i32, i32) {
    %c0_i32 = arith.constant 0 : i32
    %c0_i32_0 = arith.constant 0 : i32
    %c0_i32_1 = arith.constant 0 : i32
    return %c0_i32, %c0_i32_0 : i32, i32
  }
  func.func @transform_6(%arg0: i32) -> (i32, i32) {
    %c0_i32 = arith.constant 0 : i32
    %c0_i32_0 = arith.constant 0 : i32
    %c0_i32_1 = arith.constant 0 : i32
    return %c0_i32, %c0_i32_0 : i32, i32
  }
  func.func @transform_7(%arg0: i32) -> (i32, i32) {
    %c0_i32 = arith.constant 0 : i32
    %c0_i32_0 = arith.constant 0 : i32
    %c0_i32_1 = arith.constant 0 : i32
    return %c0_i32, %c0_i32_0 : i32, i32
  }
  func.func @transform_8(%arg0: i32) -> (i32, i32) {
    %c0_i32 = arith.constant 0 : i32
    %c0_i32_0 = arith.constant 0 : i32
    %c0_i32_1 = arith.constant 0 : i32
    return %c0_i32, %c0_i32_0 : i32, i32
  }
  func.func @transform_9(%arg0: i32) -> (i32, i32) {
    %c0_i32 = arith.constant 0 : i32
    %c0_i32_0 = arith.constant 0 : i32
    return %arg0, %c0_i32 : i32, i32
  }
}

</mosaic_0001>

<llo_original>
// kernel: actor_forward.1
$region0: #{actor_forward.1}
  #allocation0 [shape = 'u32[]', space=smem, size = 0x4, offset = 0x4, fixed_abs, tag = 'smem constant byte address 0x4 - core index']
  #allocation1 [shape = 'u32[144,128]{1,0:T(1,128)}', space=vmem, size = 0x12000, scoped, tag = 'internal scratch']
  %s0 = inlined_call_operand.vmem [shape: f32[8,16], index: 0, kind: input, shape index: {}]
  %s1 = inlined_call_operand.vmem [shape: bf16[16,32], index: 1, kind: input, shape index: {}]
  %s2 = inlined_call_operand.vmem [shape: f32[1,32], index: 2, kind: input, shape index: {}]
  %s3 = inlined_call_operand.vmem [shape: bf16[32,32], index: 3, kind: input, shape index: {}]
  %s4 = inlined_call_operand.vmem [shape: f32[1,32], index: 4, kind: input, shape index: {}]
  %s5 = inlined_call_operand.vmem [shape: bf16[32,32], index: 5, kind: input, shape index: {}]
  %s6 = inlined_call_operand.vmem [shape: f32[1,32], index: 6, kind: input, shape index: {}]
  %s7 = inlined_call_operand.vmem [shape: bf16[32,128], index: 7, kind: input, shape index: {}]
  %s8 = inlined_call_operand.vmem [shape: f32[1,128], index: 8, kind: input, shape index: {}]
  %s9 = inlined_call_operand.vmem [shape: f32[8,128], index: 9, kind: output, shape index: {}]
  %s10 = sld [smem:[#allocation0]]
  $region46: #{actor_forward.1} parent=0
    _
  %s12 = ssub.s32 1, %s10
  %s13 = scalar_select 0, %s12, %s10
  // Predicated region
  $region2: #{actor_forward.1} parent=0 // pred_check
    _
  $region3: #{actor_forward.1} parent=0 // pred_check_branch
    %15 = sbr.rel (0) target = $region5
  $region4: #{actor_forward.1} parent=0 // pred_region
    _
  $region5: #{actor_forward.1} parent=0 // pred_fallthru
    _
  // Predicated region
  $region6: #{actor_forward.1} parent=0 // pred_check
    _
  $region7: #{actor_forward.1} parent=0 // pred_check_branch
    %17 = sbr.rel (0) target = $region9
  $region8: #{actor_forward.1} parent=0 // pred_region
    _
  $region9: #{actor_forward.1} parent=0 // pred_fallthru
    _
  // Predicated region
  $region10: #{actor_forward.1} parent=0 // pred_check
    _
  $region11: #{actor_forward.1} parent=0 // pred_check_branch
    %19 = sbr.rel (0) target = $region13
  $region12: #{actor_forward.1} parent=0 // pred_region
    _
  $region13: #{actor_forward.1} parent=0 // pred_fallthru
    _
  // Predicated region
  $region14: #{actor_forward.1} parent=0 // pred_check
    _
  $region15: #{actor_forward.1} parent=0 // pred_check_branch
    %21 = sbr.rel (0) target = $region17
  $region16: #{actor_forward.1} parent=0 // pred_region
    _
  $region17: #{actor_forward.1} parent=0 // pred_fallthru
    _
  // Predicated region
  $region18: #{actor_forward.1} parent=0 // pred_check
    _
  $region19: #{actor_forward.1} parent=0 // pred_check_branch
    %23 = sbr.rel (0) target = $region21
  $region20: #{actor_forward.1} parent=0 // pred_region
    _
  $region21: #{actor_forward.1} parent=0 // pred_fallthru
    _
  // Predicated region
  $region22: #{actor_forward.1} parent=0 // pred_check
    _
  $region23: #{actor_forward.1} parent=0 // pred_check_branch
    %25 = sbr.rel (0) target = $region25
  $region24: #{actor_forward.1} parent=0 // pred_region
    _
  $region25: #{actor_forward.1} parent=0 // pred_fallthru
    _
  // Predicated region
  $region26: #{actor_forward.1} parent=0 // pred_check
    _
  $region27: #{actor_forward.1} parent=0 // pred_check_branch
    %27 = sbr.rel (0) target = $region29
  $region28: #{actor_forward.1} parent=0 // pred_region
    _
  $region29: #{actor_forward.1} parent=0 // pred_fallthru
    _
  // Predicated region
  $region30: #{actor_forward.1} parent=0 // pred_check
    _
  $region31: #{actor_forward.1} parent=0 // pred_check_branch
    %29 = sbr.rel (0) target = $region33
  $region32: #{actor_forward.1} parent=0 // pred_region
    _
  $region33: #{actor_forward.1} parent=0 // pred_fallthru
    _
  // Predicated region
  $region34: #{actor_forward.1} parent=0 // pred_check
    _
  $region35: #{actor_forward.1} parent=0 // pred_check_branch
    %31 = sbr.rel (0) target = $region37
  $region36: #{actor_forward.1} parent=0 // pred_region
    _
  $region37: #{actor_forward.1} parent=0 // pred_fallthru
    _
  %v33 = vld [vmem:[%s2] sm:$0x1]
  %v34 = vld [vmem:[%s4] sm:$0x1]
  %v35 = vld [vmem:[%s6] sm:$0x1]
  %v36 = vld [vmem:[%s8] sm:$0x1]
  %v37 = vld [vmem:[%s0] sm:$0xff]
  %v38 = vpack.c.bf16 %v37, %v37
  %v39 = vld [vmem:[%s1] sm:$0xf]
  %v40 = vld [vmem:[%s1 + $0x4] sm:$0xf]
  %v42 = vlaneseq
  %v43 = vshrl.u32 %v42, 7
  %v44 = vsub.s32 0, %v43
  %v45 = vrot.slane %v33, %v44
  %v49 = vunpack.c.l.b16 %v39
  %v50 = vunpack.c.l.b16 %v40
  %v51 = vpack.c.b16 %v50, %v49
  %vm53 = vcmask 130048
  %v55 = vsel %vm53, %v38, 0
  %57 = vmatprep.subr.bf16.mxu0 0
  %58 = vmatpush1.bf16.msra.mxu0 %v51
  %59 = vmatprep.subr.bf16.mxu0 0
  %60 = vmatpush1.bf16.msra.mxu0 0
  %61 = vmatprep.subr.bf16.mxu0 0
  %62 = vmatpush1.bf16.msra.mxu0 0
  %63 = vmatprep.subr.bf16.mxu0 0
  %64 = vmatpush1.bf16.msra.mxu0 0
  %65 = vmatprep.subr.bf16.mxu0 0
  %66 = vmatpush1.bf16.msra.mxu0 0
  %67 = vmatprep.subr.bf16.mxu0 0
  %68 = vmatpush1.bf16.msra.mxu0 0
  %69 = vmatprep.subr.bf16.mxu0 0
  %70 = vmatpush1.bf16.msra.mxu0 0
  %71 = vmatprep.subr.bf16.mxu0 0
  %72 = vmatpush1.bf16.msra.mxu0 0
  %73 = vmatprep.subr.bf16.mxu0 0
  %74 = vmatpush1.bf16.msra.mxu0 0
  %75 = vmatprep.subr.bf16.mxu0 0
  %76 = vmatpush1.bf16.msra.mxu0 0
  %77 = vmatprep.subr.bf16.mxu0 0
  %78 = vmatpush1.bf16.msra.mxu0 0
  %79 = vmatprep.subr.bf16.mxu0 0
  %80 = vmatpush1.bf16.msra.mxu0 0
  %81 = vmatprep.subr.bf16.mxu0 0
  %82 = vmatpush1.bf16.msra.mxu0 0
  %83 = vmatprep.subr.bf16.mxu0 0
  %84 = vmatpush1.bf16.msra.mxu0 0
  %85 = vmatprep.subr.bf16.mxu0 0
  %86 = vmatpush1.bf16.msra.mxu0 0
  %87 = vmatprep.subr.bf16.mxu0 0
  %88 = vmatpush1.bf16.msra.mxu0 0
  %89 = vmatprep.mubr.bf16.mxu0 0
  %90 = vmatmul.mubr.bf16.gmra.mrb[0].mxu0 %v55
  %v91 = vpop.f32.mrb[0].mxu0
  %v92 = vadd.f32 %v45, %v91
  %v93 = vpop.f32.mrb[0].mxu0
  %v94 = vpop.f32.mrb[0].mxu0
  %v95 = vpop.f32.mrb[0].mxu0
  %96 = vdwg.mxu0
  %v97 = vmax.f32 %v92, 0.0
  %v98 = vpack.c.bf16 %v97, %v97
  %v99 = vld [vmem:[%s3] sm:$0xf]
  %v100 = vld [vmem:[%s3 + $0x4] sm:$0xf]
  %v101 = vld [vmem:[%s3 + $0x8] sm:$0xf]
  %v102 = vld [vmem:[%s3 + $0xc] sm:$0xf]
  %v104 = vlaneseq
  %v105 = vshrl.u32 %v104, 7
  %v106 = vsub.s32 0, %v105
  %v107 = vrot.slane %v34, %v106
  %v113 = vunpack.c.l.b16 %v99
  %v114 = vunpack.c.l.b16 %v100
  %v115 = vunpack.c.l.b16 %v101
  %v116 = vunpack.c.l.b16 %v102
  %v117 = vpack.c.b16 %v114, %v113
  %v118 = vpack.c.b16 %v116, %v115
  %vm121 = vcmask 261120
  %v123 = vsel %vm121, %v98, 0
  %125 = vmatprep.subr.bf16.mxu0 0
  %126 = vmatpush1.bf16.msra.mxu0 %v117
  %127 = vmatprep.subr.bf16.mxu0 0
  %128 = vmatpush1.bf16.msra.mxu0 %v118
  %129 = vmatprep.subr.bf16.mxu0 0
  %130 = vmatpush1.bf16.msra.mxu0 0
  %131 = vmatprep.subr.bf16.mxu0 0
  %132 = vmatpush1.bf16.msra.mxu0 0
  %133 = vmatprep.subr.bf16.mxu0 0
  %134 = vmatpush1.bf16.msra.mxu0 0
  %135 = vmatprep.subr.bf16.mxu0 0
  %136 = vmatpush1.bf16.msra.mxu0 0
  %137 = vmatprep.subr.bf16.mxu0 0
  %138 = vmatpush1.bf16.msra.mxu0 0
  %139 = vmatprep.subr.bf16.mxu0 0
  %140 = vmatpush1.bf16.msra.mxu0 0
  %141 = vmatprep.subr.bf16.mxu0 0
  %142 = vmatpush1.bf16.msra.mxu0 0
  %143 = vmatprep.subr.bf16.mxu0 0
  %144 = vmatpush1.bf16.msra.mxu0 0
  %145 = vmatprep.subr.bf16.mxu0 0
  %146 = vmatpush1.bf16.msra.mxu0 0
  %147 = vmatprep.subr.bf16.mxu0 0
  %148 = vmatpush1.bf16.msra.mxu0 0
  %149 = vmatprep.subr.bf16.mxu0 0
  %150 = vmatpush1.bf16.msra.mxu0 0
  %151 = vmatprep.subr.bf16.mxu0 0
  %152 = vmatpush1.bf16.msra.mxu0 0
  %153 = vmatprep.subr.bf16.mxu0 0
  %154 = vmatpush1.bf16.msra.mxu0 0
  %155 = vmatprep.subr.bf16.mxu0 0
  %156 = vmatpush1.bf16.msra.mxu0 0
  %157 = vmatprep.mubr.bf16.mxu0 0
  %158 = vmatmul.mubr.bf16.gmra.mrb[0].mxu0 %v123
  %v159 = vpop.f32.mrb[0].mxu0
  %v160 = vadd.f32 %v107, %v159
  %v161 = vpop.f32.mrb[0].mxu0
  %v162 = vpop.f32.mrb[0].mxu0
  %v163 = vpop.f32.mrb[0].mxu0
  %164 = vdwg.mxu0
  %v165 = vmax.f32 %v160, 0.0
  %v166 = vpack.c.bf16 %v165, %v165
  %v167 = vld [vmem:[%s5] sm:$0xf]
  %v168 = vld [vmem:[%s5 + $0x4] sm:$0xf]
  %v169 = vld [vmem:[%s5 + $0x8] sm:$0xf]
  %v170 = vld [vmem:[%s5 + $0xc] sm:$0xf]
  %v172 = vlaneseq
  %v173 = vshrl.u32 %v172, 7
  %v174 = vsub.s32 0, %v173
  %v175 = vrot.slane %v35, %v174
  %v181 = vunpack.c.l.b16 %v167
  %v182 = vunpack.c.l.b16 %v168
  %v183 = vunpack.c.l.b16 %v169
  %v184 = vunpack.c.l.b16 %v170
  %v185 = vpack.c.b16 %v182, %v181
  %v186 = vpack.c.b16 %v184, %v183
  %v190 = vsel %vm121, %v166, 0
  %192 = vmatprep.subr.bf16.mxu0 0
  %193 = vmatpush1.bf16.msra.mxu0 %v185
  %194 = vmatprep.subr.bf16.mxu0 0
  %195 = vmatpush1.bf16.msra.mxu0 %v186
  %196 = vmatprep.subr.bf16.mxu0 0
  %197 = vmatpush1.bf16.msra.mxu0 0
  %198 = vmatprep.subr.bf16.mxu0 0
  %199 = vmatpush1.bf16.msra.mxu0 0
  %200 = vmatprep.subr.bf16.mxu0 0
  %201 = vmatpush1.bf16.msra.mxu0 0
  %202 = vmatprep.subr.bf16.mxu0 0
  %203 = vmatpush1.bf16.msra.mxu0 0
  %204 = vmatprep.subr.bf16.mxu0 0
  %205 = vmatpush1.bf16.msra.mxu0 0
  %206 = vmatprep.subr.bf16.mxu0 0
  %207 = vmatpush1.bf16.msra.mxu0 0
  %208 = vmatprep.subr.bf16.mxu0 0
  %209 = vmatpush1.bf16.msra.mxu0 0
  %210 = vmatprep.subr.bf16.mxu0 0
  %211 = vmatpush1.bf16.msra.mxu0 0
  %212 = vmatprep.subr.bf16.mxu0 0
  %213 = vmatpush1.bf16.msra.mxu0 0
  %214 = vmatprep.subr.bf16.mxu0 0
  %215 = vmatpush1.bf16.msra.mxu0 0
  %216 = vmatprep.subr.bf16.mxu0 0
  %217 = vmatpush1.bf16.msra.mxu0 0
  %218 = vmatprep.subr.bf16.mxu0 0
  %219 = vmatpush1.bf16.msra.mxu0 0
  %220 = vmatprep.subr.bf16.mxu0 0
  %221 = vmatpush1.bf16.msra.mxu0 0
  %222 = vmatprep.subr.bf16.mxu0 0
  %223 = vmatpush1.bf16.msra.mxu0 0
  %224 = vmatprep.mubr.bf16.mxu0 0
  %225 = vmatmul.mubr.bf16.gmra.mrb[0].mxu0 %v190
  %v226 = vpop.f32.mrb[0].mxu0
  %v227 = vadd.f32 %v175, %v226
  %v228 = vpop.f32.mrb[0].mxu0
  %v229 = vpop.f32.mrb[0].mxu0
  %v230 = vpop.f32.mrb[0].mxu0
  %231 = vdwg.mxu0
  %v232 = vmax.f32 %v227, 0.0
  %v233 = vpack.c.bf16 %v232, %v232
  %v234 = vld [vmem:[%s7] sm:$0xf]
  %v235 = vld [vmem:[%s7 + $0x4] sm:$0xf]
  %v236 = vld [vmem:[%s7 + $0x8] sm:$0xf]
  %v237 = vld [vmem:[%s7 + $0xc] sm:$0xf]
  %v239 = vlaneseq
  %v240 = vshrl.u32 %v239, 7
  %v241 = vsub.s32 0, %v240
  %v242 = vrot.slane %v36, %v241
  %v248 = vunpack.c.l.b16 %v234
  %v249 = vunpack.c.l.b16 %v235
  %v250 = vunpack.c.l.b16 %v236
  %v251 = vunpack.c.l.b16 %v237
  %v252 = vpack.c.b16 %v249, %v248
  %v253 = vpack.c.b16 %v251, %v250
  %v257 = vsel %vm121, %v233, 0
  %259 = vmatprep.subr.bf16.mxu0 0
  %260 = vmatpush1.bf16.msra.mxu0 %v252
  %261 = vmatprep.subr.bf16.mxu0 0
  %262 = vmatpush1.bf16.msra.mxu0 %v253
  %263 = vmatprep.subr.bf16.mxu0 0
  %264 = vmatpush1.bf16.msra.mxu0 0
  %265 = vmatprep.subr.bf16.mxu0 0
  %266 = vmatpush1.bf16.msra.mxu0 0
  %267 = vmatprep.subr.bf16.mxu0 0
  %268 = vmatpush1.bf16.msra.mxu0 0
  %269 = vmatprep.subr.bf16.mxu0 0
  %270 = vmatpush1.bf16.msra.mxu0 0
  %271 = vmatprep.subr.bf16.mxu0 0
  %272 = vmatpush1.bf16.msra.mxu0 0
  %273 = vmatprep.subr.bf16.mxu0 0
  %274 = vmatpush1.bf16.msra.mxu0 0
  %275 = vmatprep.subr.bf16.mxu0 0
  %276 = vmatpush1.bf16.msra.mxu0 0
  %277 = vmatprep.subr.bf16.mxu0 0
  %278 = vmatpush1.bf16.msra.mxu0 0
  %279 = vmatprep.subr.bf16.mxu0 0
  %280 = vmatpush1.bf16.msra.mxu0 0
  %281 = vmatprep.subr.bf16.mxu0 0
  %282 = vmatpush1.bf16.msra.mxu0 0
  %283 = vmatprep.subr.bf16.mxu0 0
  %284 = vmatpush1.bf16.msra.mxu0 0
  %285 = vmatprep.subr.bf16.mxu0 0
  %286 = vmatpush1.bf16.msra.mxu0 0
  %287 = vmatprep.subr.bf16.mxu0 0
  %288 = vmatpush1.bf16.msra.mxu0 0
  %289 = vmatprep.subr.bf16.mxu0 0
  %290 = vmatpush1.bf16.msra.mxu0 0
  %291 = vmatprep.mubr.bf16.mxu0 0
  %292 = vmatmul.mubr.bf16.gmra.mrb[0].mxu0 %v257
  %v293 = vpop.f32.mrb[0].mxu0
  %v294 = vadd.f32 %v242, %v293
  %v295 = vpop.f32.mrb[0].mxu0
  %v296 = vpop.f32.mrb[0].mxu0
  %v297 = vpop.f32.mrb[0].mxu0
  %298 = vdwg.mxu0
  %299 = vst [vmem:[%s9] sm:$0xff] %v294
  // Predicated region
  $region38: #{actor_forward.1} parent=0 // pred_check
    _
  $region39: #{actor_forward.1} parent=0 // pred_check_branch
    %301 = sbr.rel (0) target = $region41
  $region40: #{actor_forward.1} parent=0 // pred_region
    _
  $region41: #{actor_forward.1} parent=0 // pred_fallthru
    _
  // Predicated region
  $region42: #{actor_forward.1} parent=0 // pred_check
    _
  $region43: #{actor_forward.1} parent=0 // pred_check_branch
    %303 = sbr.rel (0) target = $region45
  $region44: #{actor_forward.1} parent=0 // pred_region
    _
  $region45: #{actor_forward.1} parent=0 // pred_fallthru
    _

</llo_original>
